<compile_context>
chip_gen: v5e
topology: v5e:2x2
jax: 0.10.0
libtpu: 0.0.40
codegen_flags: <defaults>
</compile_context>

<pallas_src>
import jax
import jax.numpy as jnp
from jax.experimental import pallas as pl
from jax.experimental.pallas import tpu as pltpu


def _round_up(x, m):
    return ((x + m - 1) // m) * m


def _cdiv(a, b):
    return (a + b - 1) // b


def _tpu_info():
    """Best-effort chip query (device kind + per-core VMEM capacity)."""
    kind = ""
    try:
        kind = jax.devices()[0].device_kind.lower()
    except Exception:
        pass
    vmem_cap = 0
    try:
        info = pltpu.get_tpu_info()
        vmem_cap = int(getattr(info, "vmem_capacity_bytes", 0))
    except Exception:
        vmem_cap = 0
    if vmem_cap <= 0:
        vmem_cap = 64 * 1024 * 1024  # conservative default (v7x per-TC VMEM)
    return kind, vmem_cap


def _default_tiles(kind, vmem_cap):
    """Generation-specific (tm, tk) row-tile / d_ff-chunk defaults."""
    # v5e: HBM crossover ~240 FLOP/B -> tm=256 already balanced; big tk cuts
    # the number of f32-accumulator RMW passes (v5e has a single vst slot).
    if "v5e" in kind or "v5 lite" in kind or "v5lite" in kind:
        return 256, 1024
    # v7x: 64 MiB VMEM per TensorCore -> tm=512 / tk=256 keeps the
    # double-buffered working set ~35 MiB while per-TC intensity stays above
    # the roofline crossover even with both cores streaming the same weights.
    if "v7" in kind or vmem_cap <= (64 << 20):
        return 512, 256
    # v6e and default: crossover ~650 FLOP/B (918 TF/s vs ~1.4 TB/s) -> tm~1024
    # moves the kernel from weight-streaming (HBM) bound to MXU bound.
    return 1024, 512


def _vmem_estimate(tm, tk, d_model_p, d_ff_p, x_bytes, w_bytes, out_bytes):
    """Rough double-buffered VMEM working-set estimate (bytes)."""
    n_k = max(1, d_ff_p // tk)
    return (2 * tm * d_model_p * x_bytes          # x tile (double-buffered)
            + 2 * d_model_p * tk * w_bytes        # w1 chunk (double-buffered)
            + 2 * tk * d_model_p * w_bytes        # w2 chunk (double-buffered)
            + n_k * tk * 4 + d_model_p * 4        # resident biases
            + 2 * tm * d_model_p * out_bytes      # output tile (double-buffered)
            + tm * d_model_p * 4                  # f32 accumulator scratch
            + 2 * tm * tk * 4)                    # h intermediate headroom


def ffn_kernel(x_ref, w1_ref, b1_ref, w2_ref, b2_ref, o_ref, acc_ref):
    # x_ref:  (tm, d_model_p)      bf16
    # w1_ref: (d_model_p, tk)      bf16   (k-th chunk of d_ff)
    # b1_ref: (n_k, tk)            f32    (fully resident; row k = k-th chunk)
    # w2_ref: (tk, d_model_p)      bf16   (k-th chunk of d_ff)
    # b2_ref: (1, d_model_p)       f32    (fully resident)
    # o_ref:  (tm, d_model_p)      out dtype
    # acc_ref:(tm, d_model_p)      f32 scratch accumulator
    k = pl.program_id(1)

    # First matmul chunk on the MXU with f32 accumulation.
    h = jnp.dot(x_ref[...], w1_ref[...], preferred_element_type=jnp.float32)
    # Bias (resident; sliced by reduction index, no per-step DMA) + ReLU in f32.
    h = jnp.maximum(h + b1_ref[pl.ds(k, 1), :], 0.0)
    # Dropout == identity (eval mode).
    # Second matmul chunk; accumulated over the d_ff (k) axis.
    upd = jnp.dot(h.astype(w2_ref.dtype), w2_ref[...],
                  preferred_element_type=jnp.float32)

    # k == 0: write directly (saves one full zero-init store + RMW load).
    @pl.when(k == 0)
    def _():
        acc_ref[...] = upd

    @pl.when(k > 0)
    def _():
        acc_ref[...] += upd

    @pl.when(k == pl.num_programs(1) - 1)
    def _():
        # b2 added exactly once, at finalize.
        o_ref[...] = (acc_ref[...] + b2_ref[...]).astype(o_ref.dtype)


def prepare_ffn_params(w1, b1, w2, b2, *, compute_dtype=jnp.bfloat16,
                       tm=None, tk=None):
    """Cast + pad the FFN weights ONCE at init (hoisted out of the hot path)
    and pick chip-appropriate tile sizes.

    w1: (d_model, d_ff), b1: (d_ff,), w2: (d_ff, d_model), b2: (d_model,)
    (weights already transposed from PyTorch's (out_features, in_features))."""
    d_model, d_ff = w1.shape
    assert w2.shape == (d_ff, d_model)

    kind, vmem_cap = _tpu_info()
    tm_d, tk_d = _default_tiles(kind, vmem_cap)
    tm = tm_d if tm is None else tm
    tk = tk_d if tk is None else tk

    d_model_p = _round_up(d_model, 128)
    # Distribute d_ff over ceil(d_ff / tk) equal chunks (each a multiple of 128)
    # so zero-padding waste on the reduction axis stays small.
    n_k = _cdiv(d_ff, tk)
    tk_eff = _round_up(_cdiv(d_ff, n_k), 128)
    d_ff_p = n_k * tk_eff

    w1_p = w1.astype(compute_dtype)
    if w1_p.shape != (d_model_p, d_ff_p):
        w1_p = jnp.pad(w1_p, ((0, d_model_p - d_model), (0, d_ff_p - d_ff)))
    w2_p = w2.astype(compute_dtype)
    if w2_p.shape != (d_ff_p, d_model_p):
        w2_p = jnp.pad(w2_p, ((0, d_ff_p - d_ff), (0, d_model_p - d_model)))
    b1_p = jnp.pad(b1.astype(jnp.float32),
                   (0, d_ff_p - d_ff)).reshape(n_k, tk_eff)
    b2_p = jnp.pad(b2.astype(jnp.float32),
                   (0, d_model_p - d_model)).reshape(1, d_model_p)

    return dict(w1=w1_p, b1=b1_p, w2=w2_p, b2=b2_p,
                d_model=d_model, d_ff=d_ff,
                d_model_p=d_model_p, d_ff_p=d_ff_p,
                tm=tm, tk=tk_eff,
                vmem_cap=vmem_cap, compute_dtype=compute_dtype)


def feed_forward_block(x, params):
    """x: (batch, seq, d_model); params from prepare_ffn_params()."""
    batch, seq, d_model = x.shape
    assert d_model == params["d_model"]
    rows = batch * seq
    out_dtype = x.dtype

    compute_dtype = params["compute_dtype"]
    d_model_p, d_ff_p = params["d_model_p"], params["d_ff_p"]
    tk = params["tk"]
    vmem_cap = params["vmem_cap"]
    w1_p, b1_p, w2_p, b2_p = (params["w1"], params["b1"],
                              params["w2"], params["b2"])

    x_bytes = jnp.dtype(compute_dtype).itemsize
    w_bytes = jnp.dtype(w1_p.dtype).itemsize
    out_bytes = jnp.dtype(out_dtype).itemsize

    # --- Row tile selection --------------------------------------------------
    tm = min(params["tm"], _round_up(rows, 16))
    # Shrink tm until the working set fits the per-core VMEM budget
    # (v7x: 64 MiB/TC; v5e/v6e: 128 MiB).
    budget = max(32 << 20, vmem_cap - (16 << 20))
    while (_vmem_estimate(tm, tk, d_model_p, d_ff_p,
                          x_bytes, w_bytes, out_bytes) > budget and tm > 16):
        tm = max(16, _round_up(tm // 2, 16))
    # Redistribute rows across the row tiles so an awkward rows (e.g. tm+1)
    # does not nearly double the padded MXU work. grid[0] > 1 whenever
    # rows > tm, so both TensorCores get row tiles under megacore sharding.
    n_i = _cdiv(rows, tm)
    tm = _round_up(_cdiv(rows, n_i), 16)
    rows_p = n_i * tm
    n_k = d_ff_p // tk
    grid = (n_i, n_k)

    # --- Hot-path input prep (weights were prepared once at init) ------------
    x2d = x.reshape(rows, d_model).astype(compute_dtype)
    if x2d.shape != (rows_p, d_model_p):
        x2d = jnp.pad(x2d, ((0, rows_p - rows), (0, d_model_p - d_model)))

    vmem_need = _vmem_estimate(tm, tk, d_model_p, d_ff_p,
                               x_bytes, w_bytes, out_bytes)
    vmem_limit = int(min(vmem_cap, max(32 << 20, vmem_need + (16 << 20))))

    cost = pl.CostEstimate(
        flops=4 * rows_p * d_model_p * d_ff_p,
        transcendentals=0,
        bytes_accessed=(x2d.size * x_bytes
                        # weights are re-streamed once per row tile:
                        + n_i * (w1_p.size + w2_p.size) * w_bytes
                        + b1_p.size * 4 + b2_p.size * 4
                        + rows_p * d_model_p * out_bytes))

    out = pl.pallas_call(
        ffn_kernel,
        out_shape=jax.ShapeDtypeStruct((rows_p, d_model_p), out_dtype),
        grid_spec=pltpu.PrefetchScalarGridSpec(
            num_scalar_prefetch=0,
            grid=grid,
            in_specs=[
                pl.BlockSpec((tm, d_model_p), lambda i, k: (i, 0)),   # x row tile
                pl.BlockSpec((d_model_p, tk), lambda i, k: (0, k)),   # w1 chunk
                pl.BlockSpec((n_k, tk), lambda i, k: (0, 0)),         # b1 (resident)
                pl.BlockSpec((tk, d_model_p), lambda i, k: (k, 0)),   # w2 chunk
                pl.BlockSpec((1, d_model_p), lambda i, k: (0, 0)),    # b2 (resident)
            ],
            out_specs=pl.BlockSpec((tm, d_model_p), lambda i, k: (i, 0)),
            scratch_shapes=[pltpu.VMEM((tm, d_model_p), jnp.float32)],
        ),
        compiler_params=pltpu.CompilerParams(
            dimension_semantics=("parallel", "arbitrary"),
            vmem_limit_bytes=vmem_limit),
        cost_estimate=cost,
    )(x2d, w1_p, b1_p, w2_p, b2_p)

    return out[:rows, :d_model].reshape(batch, seq, d_model)


if __name__ == "__main__":
    # Small shapes: batch=2, seq=8, d_model=32, d_ff=64
    batch, seq, d_model, d_ff = 2, 8, 32, 64

    key = jax.random.PRNGKey(0)
    kx, kw1, kb1, kw2, kb2 = jax.random.split(key, 5)

    x = jax.random.normal(kx, (batch, seq, d_model), dtype=jnp.float32)

    # PyTorch nn.Linear weights are (out_features, in_features); store
    # transposed for the x @ W layout used here.
    w1_pt = jax.random.uniform(kw1, (d_ff, d_model), jnp.float32,
                               -1.0 / d_model ** 0.5, 1.0 / d_model ** 0.5)
    b1 = jax.random.uniform(kb1, (d_ff,), jnp.float32,
                            -1.0 / d_model ** 0.5, 1.0 / d_model ** 0.5)
    w2_pt = jax.random.uniform(kw2, (d_model, d_ff), jnp.float32,
                               -1.0 / d_ff ** 0.5, 1.0 / d_ff ** 0.5)
    b2 = jax.random.uniform(kb2, (d_model,), jnp.float32,
                            -1.0 / d_ff ** 0.5, 1.0 / d_ff ** 0.5)

    w1 = w1_pt.T   # (d_model, d_ff)
    w2 = w2_pt.T   # (d_ff, d_model)

    # Weight cast + pad done ONCE (out of the per-call hot path).
    params = prepare_ffn_params(w1, b1, w2, b2)

    y = feed_forward_block(x, params)
    y = jax.block_until_ready(y)

    # Pure-JAX reference, mirroring the kernel's bf16 inputs / f32 accumulation.
    xb = x.astype(jnp.bfloat16).astype(jnp.float32)
    w1b = w1.astype(jnp.bfloat16).astype(jnp.float32)
    w2b = w2.astype(jnp.bfloat16).astype(jnp.float32)
    h = jnp.maximum(xb @ w1b + b1, 0.0)
    ref = h.astype(jnp.bfloat16).astype(jnp.float32) @ w2b + b2

    assert y.shape == (batch, seq, d_model)
    assert jnp.allclose(y, ref, atol=1e-2, rtol=1e-2), \
        float(jnp.max(jnp.abs(y - ref)))

    print("KERNEL_OK")
</pallas_src>

<mosaic_0001>
module attributes {stable_mosaic.version = 11 : i64} {
  func.func @ffn_kernel(%arg0: i32, %arg1: i32, %arg2: memref<16x128xbf16, #tpu.memory_space<vmem>>, %arg3: memref<128x128xbf16, #tpu.memory_space<vmem>>, %arg4: memref<1x128xf32, #tpu.memory_space<vmem>>, %arg5: memref<128x128xbf16, #tpu.memory_space<vmem>>, %arg6: memref<1x128xf32, #tpu.memory_space<vmem>>, %arg7: memref<16x128xf32, #tpu.memory_space<vmem>>, %arg8: memref<16x128xf32, #tpu.memory_space<vmem>>) attributes {dimension_semantics = [#tpu.dimension_semantics<parallel>, #tpu.dimension_semantics<arbitrary>], iteration_bounds = array<i64: 1, 1>, scalar_prefetch = 0 : i64, scratch_operands = 1 : i64, tpu.core_type = #tpu.core_type<tc>, window_params = [{transform_indices = @transform_0, window_bounds = array<i64: 16, 128>}, {transform_indices = @transform_1, window_bounds = array<i64: 128, 128>}, {pipeline_mode = #tpu.pipeline_mode<synchronous>, transform_indices = @transform_2, window_bounds = array<i64: 1, 128>}, {transform_indices = @transform_3, window_bounds = array<i64: 128, 128>}, {pipeline_mode = #tpu.pipeline_mode<synchronous>, transform_indices = @transform_4, window_bounds = array<i64: 1, 128>}, {transform_indices = @transform_5, window_bounds = array<i64: 16, 128>}]} {
    %c0 = arith.constant 0 : index
    %c0_0 = arith.constant 0 : index
    %0 = vector.load %arg2[%c0, %c0_0] : memref<16x128xbf16, #tpu.memory_space<vmem>>, vector<16x128xbf16>
    %c0_1 = arith.constant 0 : index
    %c0_2 = arith.constant 0 : index
    %1 = vector.load %arg3[%c0_1, %c0_2] : memref<128x128xbf16, #tpu.memory_space<vmem>>, vector<128x128xbf16>
    %cst = arith.constant dense<0.000000e+00> : vector<16x128xf32>
    %2 = tpu.matmul %0, %1, %cst {dimension_numbers = #tpu.dot_dimension_numbers<[1], [0], [0], [1], [0, 0, 1, 1], [], []>} : vector<16x128xbf16>, vector<128x128xbf16>, vector<16x128xf32> -> vector<16x128xf32>
    %3 = arith.index_cast %arg1 : i32 to index
    %c0_3 = arith.constant 0 : index
    %4 = vector.load %arg4[%3, %c0_3] : memref<1x128xf32, #tpu.memory_space<vmem>>, vector<1x128xf32>
    %5 = vector.broadcast %4 : vector<1x128xf32> to vector<16x128xf32>
    %6 = arith.addf %2, %5 : vector<16x128xf32>
    %cst_4 = arith.constant 0.000000e+00 : f32
    %7 = vector.broadcast %cst_4 : f32 to vector<16x128xf32>
    %8 = arith.maximumf %6, %7 : vector<16x128xf32>
    %9 = arith.truncf %8 : vector<16x128xf32> to vector<16x128xbf16>
    %c0_5 = arith.constant 0 : index
    %c0_6 = arith.constant 0 : index
    %10 = vector.load %arg5[%c0_5, %c0_6] : memref<128x128xbf16, #tpu.memory_space<vmem>>, vector<128x128xbf16>
    %cst_7 = arith.constant dense<0.000000e+00> : vector<16x128xf32>
    %11 = tpu.matmul %9, %10, %cst_7 {dimension_numbers = #tpu.dot_dimension_numbers<[1], [0], [0], [1], [0, 0, 1, 1], [], []>} : vector<16x128xbf16>, vector<128x128xbf16>, vector<16x128xf32> -> vector<16x128xf32>
    %c0_i32 = arith.constant 0 : i32
    %12 = arith.cmpi eq, %arg1, %c0_i32 : i32
    %13 = arith.extui %12 : i1 to i32
    %c0_i32_8 = arith.constant 0 : i32
    %14 = arith.cmpi ne, %13, %c0_i32_8 : i32
    scf.if %14 {
      %c0_13 = arith.constant 0 : index
      %c0_14 = arith.constant 0 : index
      %21 = vector.load %arg8[%c0_13, %c0_14] : memref<16x128xf32, #tpu.memory_space<vmem>>, vector<16x128xf32>
      tpu.vector_store %arg8[%c0_13, %c0_14], %11 {strides = array<i32>} : memref<16x128xf32, #tpu.memory_space<vmem>>, vector<16x128xf32>,
    } else {
    }
    %c0_i32_9 = arith.constant 0 : i32
    %15 = arith.cmpi sgt, %arg1, %c0_i32_9 : i32
    %16 = arith.extui %15 : i1 to i32
    %c0_i32_10 = arith.constant 0 : i32
    %17 = arith.cmpi ne, %16, %c0_i32_10 : i32
    scf.if %17 {
      %c0_13 = arith.constant 0 : index
      %c0_14 = arith.constant 0 : index
      %21 = vector.load %arg8[%c0_13, %c0_14] : memref<16x128xf32, #tpu.memory_space<vmem>>, vector<16x128xf32>
      %22 = arith.addf %21, %11 : vector<16x128xf32>
      %c0_15 = arith.constant 0 : index
      %c0_16 = arith.constant 0 : index
      %23 = vector.load %arg8[%c0_15, %c0_16] : memref<16x128xf32, #tpu.memory_space<vmem>>, vector<16x128xf32>
      tpu.vector_store %arg8[%c0_15, %c0_16], %22 {strides = array<i32>} : memref<16x128xf32, #tpu.memory_space<vmem>>, vector<16x128xf32>,
    } else {
    }
    %c0_i32_11 = arith.constant 0 : i32
    %18 = arith.cmpi eq, %arg1, %c0_i32_11 : i32
    %19 = arith.extui %18 : i1 to i32
    %c0_i32_12 = arith.constant 0 : i32
    %20 = arith.cmpi ne, %19, %c0_i32_12 : i32
    scf.if %20 {
      %c0_13 = arith.constant 0 : index
      %c0_14 = arith.constant 0 : index
      %21 = vector.load %arg8[%c0_13, %c0_14] : memref<16x128xf32, #tpu.memory_space<vmem>>, vector<16x128xf32>
      %c0_15 = arith.constant 0 : index
      %c0_16 = arith.constant 0 : index
      %22 = vector.load %arg6[%c0_15, %c0_16] : memref<1x128xf32, #tpu.memory_space<vmem>>, vector<1x128xf32>
      %23 = vector.broadcast %22 : vector<1x128xf32> to vector<16x128xf32>
      %24 = arith.addf %21, %23 : vector<16x128xf32>
      %c0_17 = arith.constant 0 : index
      %c0_18 = arith.constant 0 : index
      %25 = vector.load %arg7[%c0_17, %c0_18] : memref<16x128xf32, #tpu.memory_space<vmem>>, vector<16x128xf32>
      tpu.vector_store %arg7[%c0_17, %c0_18], %24 {strides = array<i32>} : memref<16x128xf32, #tpu.memory_space<vmem>>, vector<16x128xf32>,
    } else {
    }
    return
  }
  func.func @transform_0(%arg0: i32, %arg1: i32) -> (i32, i32) {
    %c0_i32 = arith.constant 0 : i32
    %c0_i32_0 = arith.constant 0 : i32
    return %arg0, %c0_i32 : i32, i32
  }
  func.func @transform_1(%arg0: i32, %arg1: i32) -> (i32, i32) {
    %c0_i32 = arith.constant 0 : i32
    %c0_i32_0 = arith.constant 0 : i32
    return %c0_i32, %arg1 : i32, i32
  }
  func.func @transform_2(%arg0: i32, %arg1: i32) -> (i32, i32) {
    %c0_i32 = arith.constant 0 : i32
    %c0_i32_0 = arith.constant 0 : i32
    %c0_i32_1 = arith.constant 0 : i32
    return %c0_i32, %c0_i32_0 : i32, i32
  }
  func.func @transform_3(%arg0: i32, %arg1: i32) -> (i32, i32) {
    %c0_i32 = arith.constant 0 : i32
    %c0_i32_0 = arith.constant 0 : i32
    return %arg1, %c0_i32 : i32, i32
  }
  func.func @transform_4(%arg0: i32, %arg1: i32) -> (i32, i32) {
    %c0_i32 = arith.constant 0 : i32
    %c0_i32_0 = arith.constant 0 : i32
    %c0_i32_1 = arith.constant 0 : i32
    return %c0_i32, %c0_i32_0 : i32, i32
  }
  func.func @transform_5(%arg0: i32, %arg1: i32) -> (i32, i32) {
    %c0_i32 = arith.constant 0 : i32
    %c0_i32_0 = arith.constant 0 : i32
    return %arg0, %c0_i32 : i32, i32
  }
}

</mosaic_0001>

<llo_original>
// kernel: tpu_custom_call.1
$region0: #{tpu_custom_call.1}
  #allocation0 [shape = 'u32[]', space=smem, size = 0x4, offset = 0x4, fixed_abs, tag = 'smem constant byte address 0x4 - core index']
  #allocation1 [shape = 'u32[72,128]{1,0:T(1,128)}', space=vmem, size = 0x9000, scoped, tag = 'internal scratch']
  #allocation2 [shape = 'f32[16,128]{1,0:T(8,128)}', space=vmem, size = 0x2000, scoped, tag = 'scratch operand']
  %s0 = inlined_call_operand.hbm [shape: bf16[16,128], index: 0, kind: input, shape index: {}]
  %s1 = inlined_call_operand.hbm [shape: bf16[128,128], index: 1, kind: input, shape index: {}]
  %s2 = inlined_call_operand.vmem [shape: f32[1,128], index: 2, kind: input, shape index: {}]
  %s3 = inlined_call_operand.hbm [shape: bf16[128,128], index: 3, kind: input, shape index: {}]
  %s4 = inlined_call_operand.vmem [shape: f32[1,128], index: 4, kind: input, shape index: {}]
  %s5 = inlined_call_operand.hbm [shape: f32[16,128], index: 5, kind: output, shape index: {}]
  %s6 = sld [smem:[#allocation0]]
  $region54: #{tpu_custom_call.1} parent=0
    _
  %s8 = ssub.s32 1, %s6
  %s9 = scalar_select 0, %s8, %s6
  $region1: #{tpu_custom_call.1} parent=0
    #allocation3 [shape = 'u8[4096]{0}', space=vmem, size = 0x1000, scoped, tag = 'input window, operand 0, single buffered']
    #allocation4 [shape = 's32[1]{0}', space=sflag, size = 0x4, scoped, tag = 'scoped memory for tpu_custom_call.1']
    #allocation5 [shape = 's32[1]{0}', space=sflag, size = 0x4, scoped, tag = 'scoped memory for tpu_custom_call.1']
    #allocation6 [shape = 'u8[32768]{0}', space=vmem, size = 0x8000, scoped, tag = 'input window, operand 1, single buffered']
    #allocation7 [shape = 's32[1]{0}', space=sflag, size = 0x4, scoped, tag = 'scoped memory for tpu_custom_call.1']
    #allocation8 [shape = 'u8[32768]{0}', space=vmem, size = 0x8000, scoped, tag = 'input window, operand 3, single buffered']
    #allocation9 [shape = 'u8[8192]{0}', space=vmem, size = 0x2000, scoped, tag = 'output window, operand 0, single buffered']
    %10 = vsyncpa [#allocation4], 0
    %11 = vsyncpa [#allocation7], 0
    %12 = vsyncpa [#allocation5], 0
    // Predicated region
    $region2: #{tpu_custom_call.1} parent=1 // pred_check
      _
    $region3: #{tpu_custom_call.1} parent=1 // pred_check_branch
      %14 = sbr.rel (0) target = $region5
    $region4: #{tpu_custom_call.1} parent=1 // pred_region
      %16 = vsyncadd [#allocation4], 0
      %s17 = sshll.u32 %s0, 4
      %s18 = int_to_ptr.hbm [resolvable:$true] %s17
      %s19 = sshll.u32 [#allocation3], 4
      %s20 = int_to_ptr.vmem [resolvable:$true] %s19
      %25 = dma.hbm_to_vmem [thread:$0]  %s18, 128, %s20, [#allocation4], 64, 64, 4
    $region5: #{tpu_custom_call.1} parent=1 // pred_fallthru
      _
    // Predicated region
    $region6: #{tpu_custom_call.1} parent=1 // pred_check
      _
    $region7: #{tpu_custom_call.1} parent=1 // pred_check_branch
      %27 = sbr.rel (0) target = $region9
    $region8: #{tpu_custom_call.1} parent=1 // pred_region
      %29 = vsyncadd [#allocation7], 0
      %s30 = sshll.u32 %s1, 4
      %s31 = int_to_ptr.hbm [resolvable:$true] %s30
      %s32 = sshll.u32 [#allocation6], 4
      %s33 = int_to_ptr.vmem [resolvable:$true] %s32
      %38 = dma.hbm_to_vmem [thread:$0]  %s31, 1024, %s33, [#allocation7], 64, 64, 4
    $region9: #{tpu_custom_call.1} parent=1 // pred_fallthru
      _
    // Predicated region
    $region10: #{tpu_custom_call.1} parent=1 // pred_check
      _
    $region11: #{tpu_custom_call.1} parent=1 // pred_check_branch
      %40 = sbr.rel (0) target = $region13
    $region12: #{tpu_custom_call.1} parent=1 // pred_region
      _
    $region13: #{tpu_custom_call.1} parent=1 // pred_fallthru
      _
    // Predicated region
    $region14: #{tpu_custom_call.1} parent=1 // pred_check
      _
    $region15: #{tpu_custom_call.1} parent=1 // pred_check_branch
      %42 = sbr.rel (0) target = $region17
    $region16: #{tpu_custom_call.1} parent=1 // pred_region
      %44 = vsyncadd [#allocation7], 0
      %s45 = sshll.u32 %s3, 4
      %s46 = int_to_ptr.hbm [resolvable:$true] %s45
      %s47 = sshll.u32 [#allocation8], 4
      %s48 = int_to_ptr.vmem [resolvable:$true] %s47
      %53 = dma.hbm_to_vmem [thread:$0]  %s46, 1024, %s48, [#allocation7], 64, 64, 4
    $region17: #{tpu_custom_call.1} parent=1 // pred_fallthru
      _
    // Predicated region
    $region18: #{tpu_custom_call.1} parent=1 // pred_check
      _
    $region19: #{tpu_custom_call.1} parent=1 // pred_check_branch
      %55 = sbr.rel (0) target = $region21
    $region20: #{tpu_custom_call.1} parent=1 // pred_region
      _
    $region21: #{tpu_custom_call.1} parent=1 // pred_fallthru
      _
    // Predicated region
    $region22: #{tpu_custom_call.1} parent=1 // pred_check
      _
    $region23: #{tpu_custom_call.1} parent=1 // pred_check_branch
      %57 = sbr.rel (0) target = $region25
    $region24: #{tpu_custom_call.1} parent=1 // pred_region
      %59 = dma.done [#allocation4], 128
    $region25: #{tpu_custom_call.1} parent=1 // pred_fallthru
      _
    // Predicated region
    $region26: #{tpu_custom_call.1} parent=1 // pred_check
      _
    $region27: #{tpu_custom_call.1} parent=1 // pred_check_branch
      %61 = sbr.rel (0) target = $region29
    $region28: #{tpu_custom_call.1} parent=1 // pred_region
      %63 = dma.done [#allocation7], 1024
    $region29: #{tpu_custom_call.1} parent=1 // pred_fallthru
      _
    // Predicated region
    $region30: #{tpu_custom_call.1} parent=1 // pred_check
      _
    $region31: #{tpu_custom_call.1} parent=1 // pred_check_branch
      %65 = sbr.rel (0) target = $region33
    $region32: #{tpu_custom_call.1} parent=1 // pred_region
      %67 = dma.done [#allocation7], 1024
    $region33: #{tpu_custom_call.1} parent=1 // pred_fallthru
      _
    %v68 = vld [vmem:[#allocation3] sm:$0xf]
    %v69 = vld [vmem:[#allocation3 + $0x4] sm:$0xf]
    %v70 = vld [vmem:[#allocation6] sm:$0xf]
    %v71 = vld [vmem:[#allocation6 + $0x4] sm:$0xf]
    %v72 = vld [vmem:[#allocation6 + $0x8] sm:$0xf]
    %v73 = vld [vmem:[#allocation6 + $0xc] sm:$0xf]
    %v74 = vld [vmem:[#allocation6 + $0x10] sm:$0xf]
    %v75 = vld [vmem:[#allocation6 + $0x14] sm:$0xf]
    %v76 = vld [vmem:[#allocation6 + $0x18] sm:$0xf]
    %v77 = vld [vmem:[#allocation6 + $0x1c] sm:$0xf]
    %v78 = vld [vmem:[#allocation6 + $0x20] sm:$0xf]
    %v79 = vld [vmem:[#allocation6 + $0x24] sm:$0xf]
    %v80 = vld [vmem:[#allocation6 + $0x28] sm:$0xf]
    %v81 = vld [vmem:[#allocation6 + $0x2c] sm:$0xf]
    %v82 = vld [vmem:[#allocation6 + $0x30] sm:$0xf]
    %v83 = vld [vmem:[#allocation6 + $0x34] sm:$0xf]
    %v84 = vld [vmem:[#allocation6 + $0x38] sm:$0xf]
    %v85 = vld [vmem:[#allocation6 + $0x3c] sm:$0xf]
    %v86 = vld [vmem:[%s2] sm:$0x1]
    %v88 = vperm.slane %v86, 0
    %v92 = vunpack.c.l.b16 %v68
    %v93 = vunpack.c.l.b16 %v69
    %v94 = vpack.c.b16 %v93, %v92
    %v112 = vunpack.c.l.b16 %v70
    %v113 = vunpack.c.l.b16 %v71
    %v114 = vunpack.c.l.b16 %v72
    %v115 = vunpack.c.l.b16 %v73
    %v116 = vunpack.c.l.b16 %v74
    %v117 = vunpack.c.l.b16 %v75
    %v118 = vunpack.c.l.b16 %v76
    %v119 = vunpack.c.l.b16 %v77
    %v120 = vunpack.c.l.b16 %v78
    %v121 = vunpack.c.l.b16 %v79
    %v122 = vunpack.c.l.b16 %v80
    %v123 = vunpack.c.l.b16 %v81
    %v124 = vunpack.c.l.b16 %v82
    %v125 = vunpack.c.l.b16 %v83
    %v126 = vunpack.c.l.b16 %v84
    %v127 = vunpack.c.l.b16 %v85
    %v128 = vpack.c.b16 %v113, %v112
    %v129 = vpack.c.b16 %v115, %v114
    %v130 = vpack.c.b16 %v117, %v116
    %v131 = vpack.c.b16 %v119, %v118
    %v132 = vpack.c.b16 %v121, %v120
    %v133 = vpack.c.b16 %v123, %v122
    %v134 = vpack.c.b16 %v125, %v124
    %v135 = vpack.c.b16 %v127, %v126
    %144 = vmatpush.bf16.msra.mxu0 %v135
    %145 = vmatpush.bf16.msra.mxu0 %v134
    %146 = vmatpush.bf16.msra.mxu0 %v133
    %147 = vmatpush.bf16.msra.mxu0 %v132
    %148 = vmatpush.bf16.msra.mxu0 %v131
    %149 = vmatpush.bf16.msra.mxu0 %v130
    %150 = vmatpush.bf16.msra.mxu0 %v129
    %151 = vmatpush.bf16.msra.mxu0 %v128
    %152 = vmatmul.bf16.gmra.mxu0 %v94
    %v153 = vpop.f32.mrf.mxu0
    %v154 = vadd.f32 %v88, %v153
    %v155 = vpop.f32.mrf.mxu0
    %v156 = vadd.f32 %v88, %v155
    %157 = vdwg.mxu0
    %v158 = vmax.f32 %v154, 0.0
    %v159 = vmax.f32 %v156, 0.0
    %v160 = vpack.c.bf16 %v159, %v158
    %v161 = vld [vmem:[#allocation8] sm:$0xf]
    %v162 = vld [vmem:[#allocation8 + $0x4] sm:$0xf]
    %v163 = vld [vmem:[#allocation8 + $0x8] sm:$0xf]
    %v164 = vld [vmem:[#allocation8 + $0xc] sm:$0xf]
    %v165 = vld [vmem:[#allocation8 + $0x10] sm:$0xf]
    %v166 = vld [vmem:[#allocation8 + $0x14] sm:$0xf]
    %v167 = vld [vmem:[#allocation8 + $0x18] sm:$0xf]
    %v168 = vld [vmem:[#allocation8 + $0x1c] sm:$0xf]
    %v169 = vld [vmem:[#allocation8 + $0x20] sm:$0xf]
    %v170 = vld [vmem:[#allocation8 + $0x24] sm:$0xf]
    %v171 = vld [vmem:[#allocation8 + $0x28] sm:$0xf]
    %v172 = vld [vmem:[#allocation8 + $0x2c] sm:$0xf]
    %v173 = vld [vmem:[#allocation8 + $0x30] sm:$0xf]
    %v174 = vld [vmem:[#allocation8 + $0x34] sm:$0xf]
    %v175 = vld [vmem:[#allocation8 + $0x38] sm:$0xf]
    %v176 = vld [vmem:[#allocation8 + $0x3c] sm:$0xf]
    %v193 = vunpack.c.l.b16 %v161
    %v194 = vunpack.c.l.b16 %v162
    %v195 = vunpack.c.l.b16 %v163
    %v196 = vunpack.c.l.b16 %v164
    %v197 = vunpack.c.l.b16 %v165
    %v198 = vunpack.c.l.b16 %v166
    %v199 = vunpack.c.l.b16 %v167
    %v200 = vunpack.c.l.b16 %v168
    %v201 = vunpack.c.l.b16 %v169
    %v202 = vunpack.c.l.b16 %v170
    %v203 = vunpack.c.l.b16 %v171
    %v204 = vunpack.c.l.b16 %v172
    %v205 = vunpack.c.l.b16 %v173
    %v206 = vunpack.c.l.b16 %v174
    %v207 = vunpack.c.l.b16 %v175
    %v208 = vunpack.c.l.b16 %v176
    %v209 = vpack.c.b16 %v194, %v193
    %v210 = vpack.c.b16 %v196, %v195
    %v211 = vpack.c.b16 %v198, %v197
    %v212 = vpack.c.b16 %v200, %v199
    %v213 = vpack.c.b16 %v202, %v201
    %v214 = vpack.c.b16 %v204, %v203
    %v215 = vpack.c.b16 %v206, %v205
    %v216 = vpack.c.b16 %v208, %v207
    %225 = vmatpush.bf16.msra.mxu0 %v216
    %226 = vmatpush.bf16.msra.mxu0 %v215
    %227 = vmatpush.bf16.msra.mxu0 %v214
    %228 = vmatpush.bf16.msra.mxu0 %v213
    %229 = vmatpush.bf16.msra.mxu0 %v212
    %230 = vmatpush.bf16.msra.mxu0 %v211
    %231 = vmatpush.bf16.msra.mxu0 %v210
    %232 = vmatpush.bf16.msra.mxu0 %v209
    %233 = vmatmul.bf16.gmra.mxu0 %v160
    %v234 = vpop.f32.mrf.mxu0
    %v235 = vadd.f32 0.0, %v234
    %v236 = vpop.f32.mrf.mxu0
    %v237 = vadd.f32 0.0, %v236
    %238 = vdwg.mxu0
    %p239 = scmp.eq.s32.totalorder 0, 0
    // Predicated region
    $region34: #{tpu_custom_call.1} parent=1 // pred_check
      %p240 = pneg %p239
    $region35: #{tpu_custom_call.1} parent=1 // pred_check_branch
      %242 = sbr.rel (%p240) target = $region37
    $region36: #{tpu_custom_call.1} parent=1 // pred_region
      %243 = vst [vmem:[#allocation2] sm:$0xff] %v235
      %244 = vst [vmem:[#allocation2 + $0x8] sm:$0xff] %v237
    $region37: #{tpu_custom_call.1} parent=1 // pred_fallthru
      _
    %p245 = scmp.gt.s32.totalorder 0, 0
    // Predicated region
    $region38: #{tpu_custom_call.1} parent=1 // pred_check
      %p246 = pneg %p245
    $region39: #{tpu_custom_call.1} parent=1 // pred_check_branch
      %248 = sbr.rel (%p246) target = $region41
    $region40: #{tpu_custom_call.1} parent=1 // pred_region
      %v249 = vld [vmem:[#allocation2] sm:$0xff]
      %v250 = vld [vmem:[#allocation2 + $0x8] sm:$0xff]
      %v251 = vadd.f32 %v249, %v235
      %v252 = vadd.f32 %v250, %v237
      %253 = vst [vmem:[#allocation2] sm:$0xff] %v251
      %254 = vst [vmem:[#allocation2 + $0x8] sm:$0xff] %v252
    $region41: #{tpu_custom_call.1} parent=1 // pred_fallthru
      _
    // Predicated region
    $region42: #{tpu_custom_call.1} parent=1 // pred_check
      %p255 = pneg %p239
    $region43: #{tpu_custom_call.1} parent=1 // pred_check_branch
      %257 = sbr.rel (%p255) target = $region45
    $region44: #{tpu_custom_call.1} parent=1 // pred_region
      %v258 = vld [vmem:[#allocation2] sm:$0xff]
      %v259 = vld [vmem:[#allocation2 + $0x8] sm:$0xff]
      %v260 = vld [vmem:[%s4] sm:$0x1]
      %v262 = vperm.slane %v260, 0
      %v264 = vadd.f32 %v258, %v262
      %v265 = vadd.f32 %v259, %v262
      %266 = vst [vmem:[#allocation9] sm:$0xff] %v264
      %267 = vst [vmem:[#allocation9 + $0x8] sm:$0xff] %v265
    $region45: #{tpu_custom_call.1} parent=1 // pred_fallthru
      _
    // Predicated region
    $region46: #{tpu_custom_call.1} parent=1 // pred_check
      _
    $region47: #{tpu_custom_call.1} parent=1 // pred_check_branch
      %269 = sbr.rel (0) target = $region49
    $region48: #{tpu_custom_call.1} parent=1 // pred_region
      %271 = vsyncadd [#allocation5], 0
      %s272 = sshll.u32 [#allocation9], 4
      %s273 = int_to_ptr.vmem [resolvable:$true] %s272
      %s274 = sshll.u32 %s5, 4
      %s275 = int_to_ptr.hbm [resolvable:$true] %s274
      %280 = dma.vmem_to_hbm [thread:$0]  %s273, 256, %s275, [#allocation5], 128, 128, 8
    $region49: #{tpu_custom_call.1} parent=1 // pred_fallthru
      _
    // Predicated region
    $region50: #{tpu_custom_call.1} parent=1 // pred_check
      _
    $region51: #{tpu_custom_call.1} parent=1 // pred_check_branch
      %282 = sbr.rel (0) target = $region53
    $region52: #{tpu_custom_call.1} parent=1 // pred_region
      %284 = dma.done [#allocation5], 256
    $region53: #{tpu_custom_call.1} parent=1 // pred_fallthru
      _
    %285 = vsyncpa [#allocation4], 1
    %286 = vsyncpa [#allocation7], 1
    %287 = vsyncpa [#allocation5], 1

</llo_original>
